<compile_context>
chip_gen: v5e
topology: v5e:2x2
jax: 0.10.0
libtpu: 0.0.40
codegen_flags: <defaults>
</compile_context>

<pallas_src>
import math

import jax
import jax.numpy as jnp
from jax.experimental import pallas as pl
from jax.experimental.pallas import tpu as pltpu


_NEG = -1e30  # large-but-finite "masked" score bias (avoids -inf propagation)


def _pick_tb(B, T1, T2, F, A):
    """How many batch examples to fold into one grid step.

    Grid steps are a serial loop (~0.35us each) and the projection matmuls have
    M = TB*T (MXU wants M >= 128/256), so fold as many examples as fit a modest
    VMEM budget while targeting >= ~256 rows per step.
    """
    bytes_per_ex = 4 * (T1 * F + 2 * T2 * F + T1 * 3 * A + 8 * T1 * T2 + T1 * A)
    cap_rows = max(1, 256 // max(T1, 1))
    cap_vmem = max(1, (8 * 1024 * 1024) // max(bytes_per_ex, 1))
    cap = max(1, min(cap_rows, cap_vmem))
    tb = 1
    for d in range(1, B + 1):
        if B % d == 0 and d <= cap:
            tb = d
    return tb


def _make_kernel(mode, n_head, d_k, TB, T1, T2, F, A, mxu_dtype):
    R1, R2 = TB * T1, TB * T2

    def proj(x_ref, rows, w_ref, b_ref):
        x = x_ref[...].reshape(rows, F).astype(mxu_dtype)
        return jnp.dot(x, w_ref[...].astype(mxu_dtype),
                       preferred_element_type=jnp.float32) + b_ref[...]

    def core(q, k, v, mask, wo_ref, bo_ref, out_ref):
        # q: (R1, A) with 1/sqrt(d_k) already folded in; k, v: (R2, A);
        # mask: (TB, Tm, T2) float, 0.0 == masked position.
        # Hoisted mask work: one keep / additive-bias pair shared by all heads.
        keep = jnp.broadcast_to((mask != 0.0).astype(jnp.float32), (TB, T1, T2))
        bias = (1.0 - keep) * _NEG

        ctx_heads = []
        for h in range(n_head):
            lo = h * d_k
            qh = q[:, lo:lo + d_k].reshape(TB, T1, d_k)
            kh = k[:, lo:lo + d_k].reshape(TB, T2, d_k)
            vh = v[:, lo:lo + d_k].reshape(TB, T2, d_k)
            # Batched over the TB examples; contracts d_k directly (no explicit K^T).
            sc = jnp.einsum("bqd,bkd->bqk",
                            qh.astype(mxu_dtype), kh.astype(mxu_dtype),
                            preferred_element_type=jnp.float32) + bias
            smax = jnp.max(sc, axis=-1, keepdims=True)
            e = jnp.exp(sc - smax)
            inv = pl.reciprocal(jnp.sum(e, axis=-1, keepdims=True), approx=True)
            attn = e * inv * keep  # post-softmax masking, as in the torch module
            ctx_heads.append(
                jnp.einsum("bqk,bkd->bqd",
                           attn.astype(mxu_dtype), vh.astype(mxu_dtype),
                           preferred_element_type=jnp.float32))

        ctx = jnp.concatenate(ctx_heads, axis=-1).reshape(R1, A)
        out = jnp.dot(ctx.astype(mxu_dtype), wo_ref[...].astype(mxu_dtype),
                      preferred_element_type=jnp.float32) + bo_ref[...]
        out_ref[...] = out.reshape(TB, T1, F).astype(out_ref.dtype)

    if mode == "qkv":      # query is key is value: single fused (F, 3A) projection
        def kernel(x_ref, m_ref, wqkv_ref, bqkv_ref, wo_ref, bo_ref, out_ref):
            qkv = proj(x_ref, R1, wqkv_ref, bqkv_ref)               # (R1, 3A)
            core(qkv[:, :A], qkv[:, A:2 * A], qkv[:, 2 * A:],
                 m_ref[...], wo_ref, bo_ref, out_ref)
    elif mode == "kv":     # key is value: fused (F, 2A) K/V projection
        def kernel(q_ref, kv_ref, m_ref, wq_ref, bq_ref, wkv_ref, bkv_ref,
                   wo_ref, bo_ref, out_ref):
            q = proj(q_ref, R1, wq_ref, bq_ref)                     # (R1, A)
            kv = proj(kv_ref, R2, wkv_ref, bkv_ref)                 # (R2, 2A)
            core(q, kv[:, :A], kv[:, A:], m_ref[...], wo_ref, bo_ref, out_ref)
    else:                  # fully general: three separate projections
        def kernel(q_ref, k_ref, v_ref, m_ref, wq_ref, bq_ref, wk_ref, bk_ref,
                   wv_ref, bv_ref, wo_ref, bo_ref, out_ref):
            q = proj(q_ref, R1, wq_ref, bq_ref)
            k = proj(k_ref, R2, wk_ref, bk_ref)
            v = proj(v_ref, R2, wv_ref, bv_ref)
            core(q, k, v, m_ref[...], wo_ref, bo_ref, out_ref)

    return kernel


def multi_headed_attention(query, key, value, mask, params, n_head,
                           *, mode=None, mxu_dtype=jnp.float32):
    """Pallas TPU implementation of MultiHeadedAttention.forward (eval mode)."""
    B, T1, F = query.shape
    T2 = key.shape[1]
    A = params["wq"].shape[1]
    assert A % n_head == 0
    d_k = A // n_head

    # Pick the fusion mode from argument aliasing (override with mode=...).
    if mode is None:
        if query is key and key is value:
            mode = "qkv"
        elif key is value:
            mode = "kv"
        else:
            mode = "none"

    if mask is None:
        mask = jnp.ones((B, 1, T2), jnp.float32)   # all-keep == no mask
    mask = mask.astype(jnp.float32)
    Tm = mask.shape[1]
    assert mask.shape in ((B, 1, T2), (B, T1, T2)), \
        "mask must have shape (B, 1, T2) or (B, T1, T2)"

    # Fold the 1/sqrt(d_k) scale into the Q projection (free at trace time).
    scale = 1.0 / math.sqrt(d_k)
    wq = params["wq"] * scale
    bq = params["bq"] * scale

    TB = _pick_tb(B, T1, T2, F, A)
    grid = (B // TB,)

    kernel = _make_kernel(mode, n_head, d_k, TB, T1, T2, F, A, mxu_dtype)

    def bspec(T):       # batched activations: one (TB, T, F) block per grid step
        return pl.BlockSpec((TB, T, F), lambda b: (b, 0, 0))

    def wspec(shape):   # grid-invariant weights/biases: whole-array block
        return pl.BlockSpec(shape, lambda b: (0,) * len(shape))

    mspec = pl.BlockSpec((TB, Tm, T2), lambda b: (b, 0, 0))

    if mode == "qkv":
        wqkv = jnp.concatenate([wq, params["wk"], params["wv"]], axis=1)   # (F, 3A)
        bqkv = jnp.concatenate([bq, params["bk"], params["bv"]], axis=1)   # (1, 3A)
        operands = (query, mask, wqkv, bqkv, params["wo"], params["bo"])
        in_specs = [bspec(T1), mspec, wspec((F, 3 * A)), wspec((1, 3 * A)),
                    wspec((A, F)), wspec((1, F))]
    elif mode == "kv":
        wkv = jnp.concatenate([params["wk"], params["wv"]], axis=1)        # (F, 2A)
        bkv = jnp.concatenate([params["bk"], params["bv"]], axis=1)        # (1, 2A)
        operands = (query, key, mask, wq, bq, wkv, bkv, params["wo"], params["bo"])
        in_specs = [bspec(T1), bspec(T2), mspec,
                    wspec((F, A)), wspec((1, A)),
                    wspec((F, 2 * A)), wspec((1, 2 * A)),
                    wspec((A, F)), wspec((1, F))]
    else:
        operands = (query, key, value, mask, wq, bq,
                    params["wk"], params["bk"], params["wv"], params["bv"],
                    params["wo"], params["bo"])
        in_specs = [bspec(T1), bspec(T2), bspec(T2), mspec,
                    wspec((F, A)), wspec((1, A)), wspec((F, A)), wspec((1, A)),
                    wspec((F, A)), wspec((1, A)), wspec((A, F)), wspec((1, F))]

    return pl.pallas_call(
        kernel,
        out_shape=jax.ShapeDtypeStruct((B, T1, F), query.dtype),
        grid_spec=pltpu.PrefetchScalarGridSpec(
            num_scalar_prefetch=0,
            grid=grid,
            in_specs=in_specs,
            out_specs=pl.BlockSpec((TB, T1, F), lambda b: (b, 0, 0))),
        compiler_params=pltpu.CompilerParams(dimension_semantics=("parallel",)),
    )(*operands)


def _reference(query, key, value, mask, params, n_head):
    """Pure-JAX reference mirroring the PyTorch forward."""
    B, T1, F = query.shape
    T2 = key.shape[1]
    A = params["wq"].shape[1]
    d_k = A // n_head

    def proj(x, w, b):
        return x @ w + b[0]

    q = proj(query, params["wq"], params["bq"]).reshape(B, T1, n_head, d_k).transpose(0, 2, 1, 3)
    k = proj(key, params["wk"], params["bk"]).reshape(B, T2, n_head, d_k).transpose(0, 2, 1, 3)
    v = proj(value, params["wv"], params["bv"]).reshape(B, T2, n_head, d_k).transpose(0, 2, 1, 3)

    scores = jnp.einsum("bhqd,bhkd->bhqk", q, k) / math.sqrt(d_k)
    if mask is not None:
        m0 = (mask[:, None, :, :] == 0)
        scores = jnp.where(m0, jnp.finfo(scores.dtype).min, scores)
        attn = jax.nn.softmax(scores, axis=-1)
        attn = jnp.where(m0, 0.0, attn)
    else:
        attn = jax.nn.softmax(scores, axis=-1)
    x = jnp.einsum("bhqk,bhkd->bhqd", attn, v)
    x = x.transpose(0, 2, 1, 3).reshape(B, T1, A)
    return x @ params["wo"] + params["bo"][0]


if __name__ == "__main__":
    # Small shapes consistent with the module: n_head=4, n_feat=32, n_attn=32.
    B, T1, T2 = 2, 8, 8
    n_head, n_feat, n_attn = 4, 32, 32

    key0 = jax.random.PRNGKey(0)
    ks = jax.random.split(key0, 16)

    def init_w(k, shape, fan_in):
        bound = 1.0 / math.sqrt(fan_in)
        return jax.random.uniform(k, shape, jnp.float32, -bound, bound)

    params = {
        "wq": init_w(ks[0], (n_feat, n_attn), n_feat),
        "bq": init_w(ks[1], (1, n_attn), n_feat),
        "wk": init_w(ks[2], (n_feat, n_attn), n_feat),
        "bk": init_w(ks[3], (1, n_attn), n_feat),
        "wv": init_w(ks[4], (n_feat, n_attn), n_feat),
        "bv": init_w(ks[5], (1, n_attn), n_feat),
        "wo": init_w(ks[6], (n_attn, n_feat), n_attn),
        "bo": init_w(ks[7], (1, n_feat), n_attn),
    }

    x = jax.random.normal(ks[8], (B, T1, n_feat), jnp.float32)
    q2 = jax.random.normal(ks[9], (B, T1, n_feat), jnp.float32)
    kv2 = jax.random.normal(ks[10], (B, T2, n_feat), jnp.float32)
    v3 = jax.random.normal(ks[11], (B, T2, n_feat), jnp.float32)

    tol = dict(atol=2e-3, rtol=2e-3)   # allowance for the approx-reciprocal softmax denom

    # 1) Self-attention (query is key is value) + (B,1,T2) mask: fused-QKV path.
    mask1 = jnp.ones((B, 1, T2), jnp.float32).at[1, 0, -2:].set(0.0)
    out1 = jax.block_until_ready(multi_headed_attention(x, x, x, mask1, params, n_head))
    ref1 = _reference(x, x, x, mask1, params, n_head)
    assert out1.shape == (B, T1, n_feat)
    assert jnp.allclose(out1, ref1, **tol), "self-attention (fused QKV) path mismatch"

    # 2) Cross-attention with shared key/value + (B,T1,T2) mask: fused-KV path.
    mask2 = (jax.random.uniform(ks[12], (B, T1, T2)) > 0.2).astype(jnp.float32)
    mask2 = mask2.at[:, :, 0].set(1.0)   # keep at least one key per query row
    out2 = jax.block_until_ready(multi_headed_attention(q2, kv2, kv2, mask2, params, n_head))
    ref2 = _reference(q2, kv2, kv2, mask2, params, n_head)
    assert jnp.allclose(out2, ref2, **tol), "shared-KV path mismatch"

    # 3) Fully general (distinct key / value), mask=None: unfused path.
    out3 = jax.block_until_ready(multi_headed_attention(q2, kv2, v3, None, params, n_head))
    ref3 = _reference(q2, kv2, v3, None, params, n_head)
    assert jnp.allclose(out3, ref3, **tol), "general (unfused) path mismatch"

    print("KERNEL_OK")
</pallas_src>

<mosaic_0001>
module attributes {stable_mosaic.version = 11 : i64} {
  func.func @kernel(%arg0: i32, %arg1: memref<2x8x32xf32, #tpu.memory_space<vmem>>, %arg2: memref<2x1x8xf32, #tpu.memory_space<vmem>>, %arg3: memref<32x96xf32, #tpu.memory_space<vmem>>, %arg4: memref<1x96xf32, #tpu.memory_space<vmem>>, %arg5: memref<32x32xf32, #tpu.memory_space<vmem>>, %arg6: memref<1x32xf32, #tpu.memory_space<vmem>>, %arg7: memref<2x8x32xf32, #tpu.memory_space<vmem>>) attributes {dimension_semantics = [#tpu.dimension_semantics<parallel>], iteration_bounds = array<i64: 1>, scalar_prefetch = 0 : i64, scratch_operands = 0 : i64, tpu.core_type = #tpu.core_type<tc>, window_params = [{transform_indices = @transform_0, window_bounds = array<i64: 2, 8, 32>}, {transform_indices = @transform_1, window_bounds = array<i64: 2, 1, 8>}, {pipeline_mode = #tpu.pipeline_mode<synchronous>, transform_indices = @transform_2, window_bounds = array<i64: 32, 96>}, {pipeline_mode = #tpu.pipeline_mode<synchronous>, transform_indices = @transform_3, window_bounds = array<i64: 1, 96>}, {pipeline_mode = #tpu.pipeline_mode<synchronous>, transform_indices = @transform_4, window_bounds = array<i64: 32, 32>}, {pipeline_mode = #tpu.pipeline_mode<synchronous>, transform_indices = @transform_5, window_bounds = array<i64: 1, 32>}, {transform_indices = @transform_6, window_bounds = array<i64: 2, 8, 32>}]} {
    %c0 = arith.constant 0 : index
    %c0_0 = arith.constant 0 : index
    %c0_1 = arith.constant 0 : index
    %0 = vector.load %arg1[%c0, %c0_0, %c0_1] : memref<2x8x32xf32, #tpu.memory_space<vmem>>, vector<2x8x32xf32>
    %1 = vector.shape_cast %0 : vector<2x8x32xf32> to vector<16x32xf32>
    %c0_2 = arith.constant 0 : index
    %c0_3 = arith.constant 0 : index
    %2 = vector.load %arg3[%c0_2, %c0_3] : memref<32x96xf32, #tpu.memory_space<vmem>>, vector<32x96xf32>
    %cst = arith.constant dense<0.000000e+00> : vector<16x96xf32>
    %3 = tpu.matmul %1, %2, %cst {dimension_numbers = #tpu.dot_dimension_numbers<[1], [0], [0], [1], [0, 0, 1, 1], [], []>} : vector<16x32xf32>, vector<32x96xf32>, vector<16x96xf32> -> vector<16x96xf32>
    %c0_4 = arith.constant 0 : index
    %c0_5 = arith.constant 0 : index
    %4 = vector.load %arg4[%c0_4, %c0_5] : memref<1x96xf32, #tpu.memory_space<vmem>>, vector<1x96xf32>
    %5 = vector.broadcast %4 : vector<1x96xf32> to vector<16x96xf32>
    %6 = arith.addf %3, %5 : vector<16x96xf32>
    %7 = vector.extract_strided_slice %6 {offsets = [0, 0], sizes = [16, 32], strides = [1, 1]} : vector<16x96xf32> to vector<16x32xf32>
    %8 = vector.extract_strided_slice %6 {offsets = [0, 32], sizes = [16, 32], strides = [1, 1]} : vector<16x96xf32> to vector<16x32xf32>
    %9 = vector.extract_strided_slice %6 {offsets = [0, 64], sizes = [16, 32], strides = [1, 1]} : vector<16x96xf32> to vector<16x32xf32>
    %c0_6 = arith.constant 0 : index
    %c0_7 = arith.constant 0 : index
    %c0_8 = arith.constant 0 : index
    %10 = vector.load %arg2[%c0_6, %c0_7, %c0_8] : memref<2x1x8xf32, #tpu.memory_space<vmem>>, vector<2x1x8xf32>
    %cst_9 = arith.constant 0.000000e+00 : f32
    %11 = vector.broadcast %cst_9 : f32 to vector<2x1x8xf32>
    %12 = arith.cmpf one, %10, %11 : vector<2x1x8xf32>
    %13 = arith.extui %12 : vector<2x1x8xi1> to vector<2x1x8xi32>
    %14 = arith.sitofp %13 : vector<2x1x8xi32> to vector<2x1x8xf32>
    %15 = vector.shape_cast %14 : vector<2x1x8xf32> to vector<2x1x8xf32>
    %16 = vector.broadcast %15 : vector<2x1x8xf32> to vector<2x8x8xf32>
    %cst_10 = arith.constant 1.000000e+00 : f32
    %17 = vector.broadcast %cst_10 : f32 to vector<2x8x8xf32>
    %18 = arith.subf %17, %16 : vector<2x8x8xf32>
    %cst_11 = arith.constant -1.000000e+30 : f32
    %19 = vector.broadcast %cst_11 : f32 to vector<2x8x8xf32>
    %20 = arith.mulf %18, %19 : vector<2x8x8xf32>
    %21 = vector.extract_strided_slice %7 {offsets = [0, 0], sizes = [16, 8], strides = [1, 1]} : vector<16x32xf32> to vector<16x8xf32>
    %22 = vector.shape_cast %21 : vector<16x8xf32> to vector<2x8x8xf32>
    %23 = vector.extract_strided_slice %8 {offsets = [0, 0], sizes = [16, 8], strides = [1, 1]} : vector<16x32xf32> to vector<16x8xf32>
    %24 = vector.shape_cast %23 : vector<16x8xf32> to vector<2x8x8xf32>
    %25 = vector.extract_strided_slice %9 {offsets = [0, 0], sizes = [16, 8], strides = [1, 1]} : vector<16x32xf32> to vector<16x8xf32>
    %26 = vector.shape_cast %25 : vector<16x8xf32> to vector<2x8x8xf32>
    "tpu.trace_start"() <{level = 10 : i32, message = "bqd,bkd->bqk"}> : () -> ()
    %cst_12 = arith.constant dense<0.000000e+00> : vector<2x8x8xf32>
    %27 = tpu.matmul %22, %24, %cst_12 {dimension_numbers = #tpu.dot_dimension_numbers<[2], [2], [1], [1], [0, 0, 0, 1, 1, 1], [0], [0]>} : vector<2x8x8xf32>, vector<2x8x8xf32>, vector<2x8x8xf32> -> vector<2x8x8xf32>
    "tpu.trace_stop"() : () -> ()
    %28 = arith.addf %27, %20 : vector<2x8x8xf32>
    %cst_13 = arith.constant dense<0xFF800000> : vector<2x8xf32>
    %29 = vector.multi_reduction <maximumf>, %28, %cst_13 [2] : vector<2x8x8xf32> to vector<2x8xf32>
    %30 = vector.shape_cast %29 : vector<2x8xf32> to vector<2x8x1xf32>
    %31 = vector.broadcast %30 : vector<2x8x1xf32> to vector<2x8x8xf32>
    %32 = arith.subf %28, %31 : vector<2x8x8xf32>
    %33 = math.exp %32 : vector<2x8x8xf32>
    %cst_14 = arith.constant dense<0.000000e+00> : vector<2x8xf32>
    %34 = vector.multi_reduction <add>, %33, %cst_14 [2] : vector<2x8x8xf32> to vector<2x8xf32>
    %35 = vector.shape_cast %34 : vector<2x8xf32> to vector<2x8x1xf32>
    %36 = tpu.reciprocal %35 {approx = true} : vector<2x8x1xf32> -> vector<2x8x1xf32>
    %37 = vector.broadcast %36 : vector<2x8x1xf32> to vector<2x8x8xf32>
    %38 = arith.mulf %33, %37 : vector<2x8x8xf32>
    %39 = arith.mulf %38, %16 : vector<2x8x8xf32>
    "tpu.trace_start"() <{level = 10 : i32, message = "bqk,bkd->bqd"}> : () -> ()
    %cst_15 = arith.constant dense<0.000000e+00> : vector<2x8x8xf32>
    %40 = tpu.matmul %39, %26, %cst_15 {dimension_numbers = #tpu.dot_dimension_numbers<[2], [1], [1], [2], [0, 0, 0, 1, 1, 2], [0], [0]>} : vector<2x8x8xf32>, vector<2x8x8xf32>, vector<2x8x8xf32> -> vector<2x8x8xf32>
    "tpu.trace_stop"() : () -> ()
    %41 = vector.extract_strided_slice %7 {offsets = [0, 8], sizes = [16, 8], strides = [1, 1]} : vector<16x32xf32> to vector<16x8xf32>
    %42 = vector.shape_cast %41 : vector<16x8xf32> to vector<2x8x8xf32>
    %43 = vector.extract_strided_slice %8 {offsets = [0, 8], sizes = [16, 8], strides = [1, 1]} : vector<16x32xf32> to vector<16x8xf32>
    %44 = vector.shape_cast %43 : vector<16x8xf32> to vector<2x8x8xf32>
    %45 = vector.extract_strided_slice %9 {offsets = [0, 8], sizes = [16, 8], strides = [1, 1]} : vector<16x32xf32> to vector<16x8xf32>
    %46 = vector.shape_cast %45 : vector<16x8xf32> to vector<2x8x8xf32>
    "tpu.trace_start"() <{level = 10 : i32, message = "bqd,bkd->bqk"}> : () -> ()
    %cst_16 = arith.constant dense<0.000000e+00> : vector<2x8x8xf32>
    %47 = tpu.matmul %42, %44, %cst_16 {dimension_numbers = #tpu.dot_dimension_numbers<[2], [2], [1], [1], [0, 0, 0, 1, 1, 1], [0], [0]>} : vector<2x8x8xf32>, vector<2x8x8xf32>, vector<2x8x8xf32> -> vector<2x8x8xf32>
    "tpu.trace_stop"() : () -> ()
    %48 = arith.addf %47, %20 : vector<2x8x8xf32>
    %cst_17 = arith.constant dense<0xFF800000> : vector<2x8xf32>
    %49 = vector.multi_reduction <maximumf>, %48, %cst_17 [2] : vector<2x8x8xf32> to vector<2x8xf32>
    %50 = vector.shape_cast %49 : vector<2x8xf32> to vector<2x8x1xf32>
    %51 = vector.broadcast %50 : vector<2x8x1xf32> to vector<2x8x8xf32>
    %52 = arith.subf %48, %51 : vector<2x8x8xf32>
    %53 = math.exp %52 : vector<2x8x8xf32>
    %cst_18 = arith.constant dense<0.000000e+00> : vector<2x8xf32>
    %54 = vector.multi_reduction <add>, %53, %cst_18 [2] : vector<2x8x8xf32> to vector<2x8xf32>
    %55 = vector.shape_cast %54 : vector<2x8xf32> to vector<2x8x1xf32>
    %56 = tpu.reciprocal %55 {approx = true} : vector<2x8x1xf32> -> vector<2x8x1xf32>
    %57 = vector.broadcast %56 : vector<2x8x1xf32> to vector<2x8x8xf32>
    %58 = arith.mulf %53, %57 : vector<2x8x8xf32>
    %59 = arith.mulf %58, %16 : vector<2x8x8xf32>
    "tpu.trace_start"() <{level = 10 : i32, message = "bqk,bkd->bqd"}> : () -> ()
    %cst_19 = arith.constant dense<0.000000e+00> : vector<2x8x8xf32>
    %60 = tpu.matmul %59, %46, %cst_19 {dimension_numbers = #tpu.dot_dimension_numbers<[2], [1], [1], [2], [0, 0, 0, 1, 1, 2], [0], [0]>} : vector<2x8x8xf32>, vector<2x8x8xf32>, vector<2x8x8xf32> -> vector<2x8x8xf32>
    "tpu.trace_stop"() : () -> ()
    %61 = vector.extract_strided_slice %7 {offsets = [0, 16], sizes = [16, 8], strides = [1, 1]} : vector<16x32xf32> to vector<16x8xf32>
    %62 = vector.shape_cast %61 : vector<16x8xf32> to vector<2x8x8xf32>
    %63 = vector.extract_strided_slice %8 {offsets = [0, 16], sizes = [16, 8], strides = [1, 1]} : vector<16x32xf32> to vector<16x8xf32>
    %64 = vector.shape_cast %63 : vector<16x8xf32> to vector<2x8x8xf32>
    %65 = vector.extract_strided_slice %9 {offsets = [0, 16], sizes = [16, 8], strides = [1, 1]} : vector<16x32xf32> to vector<16x8xf32>
    %66 = vector.shape_cast %65 : vector<16x8xf32> to vector<2x8x8xf32>
    "tpu.trace_start"() <{level = 10 : i32, message = "bqd,bkd->bqk"}> : () -> ()
    %cst_20 = arith.constant dense<0.000000e+00> : vector<2x8x8xf32>
    %67 = tpu.matmul %62, %64, %cst_20 {dimension_numbers = #tpu.dot_dimension_numbers<[2], [2], [1], [1], [0, 0, 0, 1, 1, 1], [0], [0]>} : vector<2x8x8xf32>, vector<2x8x8xf32>, vector<2x8x8xf32> -> vector<2x8x8xf32>
    "tpu.trace_stop"() : () -> ()
    %68 = arith.addf %67, %20 : vector<2x8x8xf32>
    %cst_21 = arith.constant dense<0xFF800000> : vector<2x8xf32>
    %69 = vector.multi_reduction <maximumf>, %68, %cst_21 [2] : vector<2x8x8xf32> to vector<2x8xf32>
    %70 = vector.shape_cast %69 : vector<2x8xf32> to vector<2x8x1xf32>
    %71 = vector.broadcast %70 : vector<2x8x1xf32> to vector<2x8x8xf32>
    %72 = arith.subf %68, %71 : vector<2x8x8xf32>
    %73 = math.exp %72 : vector<2x8x8xf32>
    %cst_22 = arith.constant dense<0.000000e+00> : vector<2x8xf32>
    %74 = vector.multi_reduction <add>, %73, %cst_22 [2] : vector<2x8x8xf32> to vector<2x8xf32>
    %75 = vector.shape_cast %74 : vector<2x8xf32> to vector<2x8x1xf32>
    %76 = tpu.reciprocal %75 {approx = true} : vector<2x8x1xf32> -> vector<2x8x1xf32>
    %77 = vector.broadcast %76 : vector<2x8x1xf32> to vector<2x8x8xf32>
    %78 = arith.mulf %73, %77 : vector<2x8x8xf32>
    %79 = arith.mulf %78, %16 : vector<2x8x8xf32>
    "tpu.trace_start"() <{level = 10 : i32, message = "bqk,bkd->bqd"}> : () -> ()
    %cst_23 = arith.constant dense<0.000000e+00> : vector<2x8x8xf32>
    %80 = tpu.matmul %79, %66, %cst_23 {dimension_numbers = #tpu.dot_dimension_numbers<[2], [1], [1], [2], [0, 0, 0, 1, 1, 2], [0], [0]>} : vector<2x8x8xf32>, vector<2x8x8xf32>, vector<2x8x8xf32> -> vector<2x8x8xf32>
    "tpu.trace_stop"() : () -> ()
    %81 = vector.extract_strided_slice %7 {offsets = [0, 24], sizes = [16, 8], strides = [1, 1]} : vector<16x32xf32> to vector<16x8xf32>
    %82 = vector.shape_cast %81 : vector<16x8xf32> to vector<2x8x8xf32>
    %83 = vector.extract_strided_slice %8 {offsets = [0, 24], sizes = [16, 8], strides = [1, 1]} : vector<16x32xf32> to vector<16x8xf32>
    %84 = vector.shape_cast %83 : vector<16x8xf32> to vector<2x8x8xf32>
    %85 = vector.extract_strided_slice %9 {offsets = [0, 24], sizes = [16, 8], strides = [1, 1]} : vector<16x32xf32> to vector<16x8xf32>
    %86 = vector.shape_cast %85 : vector<16x8xf32> to vector<2x8x8xf32>
    "tpu.trace_start"() <{level = 10 : i32, message = "bqd,bkd->bqk"}> : () -> ()
    %cst_24 = arith.constant dense<0.000000e+00> : vector<2x8x8xf32>
    %87 = tpu.matmul %82, %84, %cst_24 {dimension_numbers = #tpu.dot_dimension_numbers<[2], [2], [1], [1], [0, 0, 0, 1, 1, 1], [0], [0]>} : vector<2x8x8xf32>, vector<2x8x8xf32>, vector<2x8x8xf32> -> vector<2x8x8xf32>
    "tpu.trace_stop"() : () -> ()
    %88 = arith.addf %87, %20 : vector<2x8x8xf32>
    %cst_25 = arith.constant dense<0xFF800000> : vector<2x8xf32>
    %89 = vector.multi_reduction <maximumf>, %88, %cst_25 [2] : vector<2x8x8xf32> to vector<2x8xf32>
    %90 = vector.shape_cast %89 : vector<2x8xf32> to vector<2x8x1xf32>
    %91 = vector.broadcast %90 : vector<2x8x1xf32> to vector<2x8x8xf32>
    %92 = arith.subf %88, %91 : vector<2x8x8xf32>
    %93 = math.exp %92 : vector<2x8x8xf32>
    %cst_26 = arith.constant dense<0.000000e+00> : vector<2x8xf32>
    %94 = vector.multi_reduction <add>, %93, %cst_26 [2] : vector<2x8x8xf32> to vector<2x8xf32>
    %95 = vector.shape_cast %94 : vector<2x8xf32> to vector<2x8x1xf32>
    %96 = tpu.reciprocal %95 {approx = true} : vector<2x8x1xf32> -> vector<2x8x1xf32>
    %97 = vector.broadcast %96 : vector<2x8x1xf32> to vector<2x8x8xf32>
    %98 = arith.mulf %93, %97 : vector<2x8x8xf32>
    %99 = arith.mulf %98, %16 : vector<2x8x8xf32>
    "tpu.trace_start"() <{level = 10 : i32, message = "bqk,bkd->bqd"}> : () -> ()
    %cst_27 = arith.constant dense<0.000000e+00> : vector<2x8x8xf32>
    %100 = tpu.matmul %99, %86, %cst_27 {dimension_numbers = #tpu.dot_dimension_numbers<[2], [1], [1], [2], [0, 0, 0, 1, 1, 2], [0], [0]>} : vector<2x8x8xf32>, vector<2x8x8xf32>, vector<2x8x8xf32> -> vector<2x8x8xf32>
    "tpu.trace_stop"() : () -> ()
    %101 = tpu.concatenate %40, %60, %80, %100 in 2 : vector<2x8x8xf32>, vector<2x8x8xf32>, vector<2x8x8xf32>, vector<2x8x8xf32> -> vector<2x8x32xf32>
    %102 = vector.shape_cast %101 : vector<2x8x32xf32> to vector<16x32xf32>
    %c0_28 = arith.constant 0 : index
    %c0_29 = arith.constant 0 : index
    %103 = vector.load %arg5[%c0_28, %c0_29] : memref<32x32xf32, #tpu.memory_space<vmem>>, vector<32x32xf32>
    %cst_30 = arith.constant dense<0.000000e+00> : vector<16x32xf32>
    %104 = tpu.matmul %102, %103, %cst_30 {dimension_numbers = #tpu.dot_dimension_numbers<[1], [0], [0], [1], [0, 0, 1, 1], [], []>} : vector<16x32xf32>, vector<32x32xf32>, vector<16x32xf32> -> vector<16x32xf32>
    %c0_31 = arith.constant 0 : index
    %c0_32 = arith.constant 0 : index
    %105 = vector.load %arg6[%c0_31, %c0_32] : memref<1x32xf32, #tpu.memory_space<vmem>>, vector<1x32xf32>
    %106 = vector.broadcast %105 : vector<1x32xf32> to vector<16x32xf32>
    %107 = arith.addf %104, %106 : vector<16x32xf32>
    %108 = vector.shape_cast %107 : vector<16x32xf32> to vector<2x8x32xf32>
    %c0_33 = arith.constant 0 : index
    %c0_34 = arith.constant 0 : index
    %c0_35 = arith.constant 0 : index
    %109 = vector.load %arg7[%c0_33, %c0_34, %c0_35] : memref<2x8x32xf32, #tpu.memory_space<vmem>>, vector<2x8x32xf32>
    tpu.vector_store %arg7[%c0_33, %c0_34, %c0_35], %108 {strides = array<i32>} : memref<2x8x32xf32, #tpu.memory_space<vmem>>, vector<2x8x32xf32>,
    return
  }
  func.func @transform_0(%arg0: i32) -> (i32, i32, i32) {
    %c0_i32 = arith.constant 0 : i32
    %c0_i32_0 = arith.constant 0 : i32
    %c0_i32_1 = arith.constant 0 : i32
    return %arg0, %c0_i32, %c0_i32_0 : i32, i32, i32
  }
  func.func @transform_1(%arg0: i32) -> (i32, i32, i32) {
    %c0_i32 = arith.constant 0 : i32
    %c0_i32_0 = arith.constant 0 : i32
    %c0_i32_1 = arith.constant 0 : i32
    return %arg0, %c0_i32, %c0_i32_0 : i32, i32, i32
  }
  func.func @transform_2(%arg0: i32) -> (i32, i32) {
    %c0_i32 = arith.constant 0 : i32
    %c0_i32_0 = arith.constant 0 : i32
    %c0_i32_1 = arith.constant 0 : i32
    return %c0_i32, %c0_i32_0 : i32, i32
  }
  func.func @transform_3(%arg0: i32) -> (i32, i32) {
    %c0_i32 = arith.constant 0 : i32
    %c0_i32_0 = arith.constant 0 : i32
    %c0_i32_1 = arith.constant 0 : i32
    return %c0_i32, %c0_i32_0 : i32, i32
  }
  func.func @transform_4(%arg0: i32) -> (i32, i32) {
    %c0_i32 = arith.constant 0 : i32
    %c0_i32_0 = arith.constant 0 : i32
    %c0_i32_1 = arith.constant 0 : i32
    return %c0_i32, %c0_i32_0 : i32, i32
  }
  func.func @transform_5(%arg0: i32) -> (i32, i32) {
    %c0_i32 = arith.constant 0 : i32
    %c0_i32_0 = arith.constant 0 : i32
    %c0_i32_1 = arith.constant 0 : i32
    return %c0_i32, %c0_i32_0 : i32, i32
  }
  func.func @transform_6(%arg0: i32) -> (i32, i32, i32) {
    %c0_i32 = arith.constant 0 : i32
    %c0_i32_0 = arith.constant 0 : i32
    %c0_i32_1 = arith.constant 0 : i32
    return %arg0, %c0_i32, %c0_i32_0 : i32, i32, i32
  }
}

</mosaic_0001>

<llo_original>
// kernel: tpu_custom_call.1
$region0: #{tpu_custom_call.1}
  #allocation0 [shape = 'u32[]', space=smem, size = 0x4, offset = 0x4, fixed_abs, tag = 'smem constant byte address 0x4 - core index']
  #allocation1 [shape = 'u32[72,128]{1,0:T(1,128)}', space=vmem, size = 0x9000, scoped, tag = 'internal scratch']
  %s0 = inlined_call_operand.hbm [shape: f32[2,8,32], index: 0, kind: input, shape index: {}]
  %s1 = inlined_call_operand.hbm [shape: f32[2,1,8], index: 1, kind: input, shape index: {}]
  %s2 = inlined_call_operand.hbm [shape: f32[32,96], index: 2, kind: input, shape index: {}]
  %s3 = inlined_call_operand.vmem [shape: f32[1,96], index: 3, kind: input, shape index: {}]
  %s4 = inlined_call_operand.hbm [shape: f32[32,32], index: 4, kind: input, shape index: {}]
  %s5 = inlined_call_operand.vmem [shape: f32[1,32], index: 5, kind: input, shape index: {}]
  %s6 = inlined_call_operand.hbm [shape: f32[2,8,32], index: 6, kind: output, shape index: {}]
  %s7 = sld [smem:[#allocation0]]
  $region50: #{tpu_custom_call.1} parent=0
    _
  %s9 = ssub.s32 1, %s7
  %s10 = scalar_select 0, %s9, %s7
  $region1: #{tpu_custom_call.1} parent=0
    #allocation2 [shape = 'u8[8192]{0}', space=vmem, size = 0x2000, scoped, tag = 'input window, operand 0, single buffered']
    #allocation3 [shape = 's32[1]{0}', space=sflag, size = 0x4, scoped, tag = 'scoped memory for tpu_custom_call.1']
    #allocation4 [shape = 's32[1]{0}', space=sflag, size = 0x4, scoped, tag = 'scoped memory for tpu_custom_call.1']
    #allocation5 [shape = 'u8[1024]{0}', space=vmem, size = 0x400, scoped, tag = 'input window, operand 1, single buffered']
    #allocation6 [shape = 's32[1]{0}', space=sflag, size = 0x4, scoped, tag = 'scoped memory for tpu_custom_call.1']
    #allocation7 [shape = 'u8[16384]{0}', space=vmem, size = 0x4000, scoped, tag = 'input window, operand 2, single buffered']
    #allocation8 [shape = 'u8[16384]{0}', space=vmem, size = 0x4000, scoped, tag = 'input window, operand 4, single buffered']
    #allocation9 [shape = 's32[1]{0}', space=sflag, size = 0x4, scoped, tag = 'scoped memory for tpu_custom_call.1']
    #allocation10 [shape = 'u8[8192]{0}', space=vmem, size = 0x2000, scoped, tag = 'output window, operand 0, single buffered']
    %11 = vsyncpa [#allocation3], 0
    %12 = vsyncpa [#allocation6], 0
    %13 = vsyncpa [#allocation9], 0
    %14 = vsyncpa [#allocation4], 0
    // Predicated region
    $region2: #{tpu_custom_call.1} parent=1 // pred_check
      _
    $region3: #{tpu_custom_call.1} parent=1 // pred_check_branch
      %16 = sbr.rel (0) target = $region5
    $region4: #{tpu_custom_call.1} parent=1 // pred_region
      %18 = vsyncadd [#allocation3], 0
      %s19 = sshll.u32 %s0, 4
      %s20 = int_to_ptr.hbm [resolvable:$true] %s19
      %s21 = sshll.u32 [#allocation2], 4
      %s22 = int_to_ptr.vmem [resolvable:$true] %s21
      %27 = dma.hbm_to_vmem [thread:$0]  %s20, 256, %s22, [#allocation3], 128, 128, 8
    $region5: #{tpu_custom_call.1} parent=1 // pred_fallthru
      _
    // Predicated region
    $region6: #{tpu_custom_call.1} parent=1 // pred_check
      _
    $region7: #{tpu_custom_call.1} parent=1 // pred_check_branch
      %29 = sbr.rel (0) target = $region9
    $region8: #{tpu_custom_call.1} parent=1 // pred_region
      %31 = vsyncadd [#allocation6], 0
      %s32 = sshll.u32 %s1, 4
      %s33 = int_to_ptr.hbm [resolvable:$true] %s32
      %s34 = sshll.u32 [#allocation5], 4
      %s35 = int_to_ptr.vmem [resolvable:$true] %s34
      %40 = dma.hbm_to_vmem [thread:$0]  %s33, 32, %s35, [#allocation6], 16, 16, 1
    $region9: #{tpu_custom_call.1} parent=1 // pred_fallthru
      _
    // Predicated region
    $region10: #{tpu_custom_call.1} parent=1 // pred_check
      _
    $region11: #{tpu_custom_call.1} parent=1 // pred_check_branch
      %42 = sbr.rel (0) target = $region13
    $region12: #{tpu_custom_call.1} parent=1 // pred_region
      %44 = vsyncadd [#allocation6], 0
      %s45 = sshll.u32 %s2, 4
      %s46 = int_to_ptr.hbm [resolvable:$true] %s45
      %s47 = sshll.u32 [#allocation7], 4
      %s48 = int_to_ptr.vmem [resolvable:$true] %s47
      %53 = dma.hbm_to_vmem [thread:$0]  %s46, 512, %s48, [#allocation6], 128, 128, 8
    $region13: #{tpu_custom_call.1} parent=1 // pred_fallthru
      _
    // Predicated region
    $region14: #{tpu_custom_call.1} parent=1 // pred_check
      _
    $region15: #{tpu_custom_call.1} parent=1 // pred_check_branch
      %55 = sbr.rel (0) target = $region17
    $region16: #{tpu_custom_call.1} parent=1 // pred_region
      _
    $region17: #{tpu_custom_call.1} parent=1 // pred_fallthru
      _
    // Predicated region
    $region18: #{tpu_custom_call.1} parent=1 // pred_check
      _
    $region19: #{tpu_custom_call.1} parent=1 // pred_check_branch
      %57 = sbr.rel (0) target = $region21
    $region20: #{tpu_custom_call.1} parent=1 // pred_region
      %59 = vsyncadd [#allocation9], 0
      %s60 = sshll.u32 %s4, 4
      %s61 = int_to_ptr.hbm [resolvable:$true] %s60
      %s62 = sshll.u32 [#allocation8], 4
      %s63 = int_to_ptr.vmem [resolvable:$true] %s62
      %68 = dma.hbm_to_vmem [thread:$0]  %s61, 512, %s63, [#allocation9], 128, 128, 8
    $region21: #{tpu_custom_call.1} parent=1 // pred_fallthru
      _
    // Predicated region
    $region22: #{tpu_custom_call.1} parent=1 // pred_check
      _
    $region23: #{tpu_custom_call.1} parent=1 // pred_check_branch
      %70 = sbr.rel (0) target = $region25
    $region24: #{tpu_custom_call.1} parent=1 // pred_region
      _
    $region25: #{tpu_custom_call.1} parent=1 // pred_fallthru
      _
    // Predicated region
    $region26: #{tpu_custom_call.1} parent=1 // pred_check
      _
    $region27: #{tpu_custom_call.1} parent=1 // pred_check_branch
      %72 = sbr.rel (0) target = $region29
    $region28: #{tpu_custom_call.1} parent=1 // pred_region
      %74 = dma.done [#allocation3], 256
    $region29: #{tpu_custom_call.1} parent=1 // pred_fallthru
      _
    // Predicated region
    $region30: #{tpu_custom_call.1} parent=1 // pred_check
      _
    $region31: #{tpu_custom_call.1} parent=1 // pred_check_branch
      %76 = sbr.rel (0) target = $region33
    $region32: #{tpu_custom_call.1} parent=1 // pred_region
      %78 = dma.done [#allocation6], 32
    $region33: #{tpu_custom_call.1} parent=1 // pred_fallthru
      _
    // Predicated region
    $region34: #{tpu_custom_call.1} parent=1 // pred_check
      _
    $region35: #{tpu_custom_call.1} parent=1 // pred_check_branch
      %80 = sbr.rel (0) target = $region37
    $region36: #{tpu_custom_call.1} parent=1 // pred_region
      %82 = dma.done [#allocation6], 512
    $region37: #{tpu_custom_call.1} parent=1 // pred_fallthru
      _
    // Predicated region
    $region38: #{tpu_custom_call.1} parent=1 // pred_check
      _
    $region39: #{tpu_custom_call.1} parent=1 // pred_check_branch
      %84 = sbr.rel (0) target = $region41
    $region40: #{tpu_custom_call.1} parent=1 // pred_region
      %86 = dma.done [#allocation9], 512
    $region41: #{tpu_custom_call.1} parent=1 // pred_fallthru
      _
    %v87 = vld [vmem:[#allocation2] sm:$0xff]
    %v88 = vld [vmem:[#allocation2 + $0x8] sm:$0xff]
    %v89 = vld [vmem:[#allocation7] sm:$0xff]
    %v90 = vld [vmem:[#allocation7 + $0x8] sm:$0xff]
    %v91 = vld [vmem:[#allocation7 + $0x10] sm:$0xff]
    %v92 = vld [vmem:[#allocation7 + $0x18] sm:$0xff]
    %v93 = vld [vmem:[%s3] sm:$0x1]
    %v95 = vperm.slane %v93, 0
    %vm97 = vcmask 261120
    %v99 = vsel %vm97, %v87, 0
    %v102 = vsel %vm97, %v88, 0
    %104 = vmatpush.msra.mxu0 0.0
    %105 = vmatpush.msra.mxu0 0.0
    %106 = vmatpush.msra.mxu0 0.0
    %107 = vmatpush.msra.mxu0 0.0
    %108 = vmatpush.msra.mxu0 0.0
    %109 = vmatpush.msra.mxu0 0.0
    %110 = vmatpush.msra.mxu0 0.0
    %111 = vmatpush.msra.mxu0 0.0
    %112 = vmatpush.msra.mxu0 0.0
    %113 = vmatpush.msra.mxu0 0.0
    %114 = vmatpush.msra.mxu0 0.0
    %115 = vmatpush.msra.mxu0 0.0
    %116 = vmatpush.msra.mxu0 %v92
    %117 = vmatpush.msra.mxu0 %v91
    %118 = vmatpush.msra.mxu0 %v90
    %119 = vmatpush.msra.mxu0 %v89
    %120 = vmatmul.f32.gmra.mxu0 %v99
    %v121 = vpop.f32.mrf.mxu0
    %v122 = vadd.f32 %v95, %v121
    %123 = vmatmul.f32.gmra.mxu0 %v102
    %v124 = vpop.f32.mrf.mxu0
    %v125 = vadd.f32 %v95, %v124
    %126 = vdwg.mxu0
    %v127 = vld [vmem:[#allocation5] sm:$0x1]
    %v128 = vld [vmem:[#allocation5 + $0x1] sm:$0x1]
    %vm129 = vcmp.ne.f32.partialorder %v127, 0.0
    %vm130 = vcmp.ne.f32.partialorder %v128, 0.0
    %v131 = vsel %vm129, 1, 0
    %v132 = vsel %vm130, 1, 0
    %v133 = vcvt.s32.f32 %v131
    %v134 = vcvt.s32.f32 %v132
    %v137 = vperm.slane %v133, 0
    %v138 = vperm.slane %v134, 0
    %v141 = vsub.f32 1.0, %v137
    %v142 = vsub.f32 1.0, %v138
    %v143 = vmul.f32 %v141, -1e+30
    %v144 = vmul.f32 %v142, -1e+30
    %146 = vrot.lane.b32.xlu0 %v122, 96
    %v147 = vpop.permute.xlu0 %146
    %vm148 = vcmask 64512
    %v149 = vsel %vm148, %v122, 0
    %v151 = vsel %vm148, %v147, 0
    %153 = vmatpush.xpose.msra.mxu0 0.0
    %154 = vmatpush.xpose.msra.mxu0 0.0
    %155 = vmatpush.xpose.msra.mxu0 0.0
    %156 = vmatpush.xpose.msra.mxu0 0.0
    %157 = vmatpush.xpose.msra.mxu0 0.0
    %158 = vmatpush.xpose.msra.mxu0 0.0
    %159 = vmatpush.xpose.msra.mxu0 0.0
    %160 = vmatpush.xpose.msra.mxu0 0.0
    %161 = vmatpush.xpose.msra.mxu0 0.0
    %162 = vmatpush.xpose.msra.mxu0 0.0
    %163 = vmatpush.xpose.msra.mxu0 0.0
    %164 = vmatpush.xpose.msra.mxu0 0.0
    %165 = vmatpush.xpose.msra.mxu0 0.0
    %166 = vmatpush.xpose.msra.mxu0 0.0
    %167 = vmatpush.xpose.msra.mxu0 0.0
    %168 = vmatpush.xpose.msra.mxu0 %v151
    %169 = vmatmul.f32.gmra.mxu0 %v149
    %v170 = vpop.f32.mrf.mxu0
    %v171 = vadd.f32 %v143, %v170
    %172 = vdwg.mxu0
    %174 = vrot.lane.b32.xlu0 %v125, 96
    %v175 = vpop.permute.xlu0 %174
    %v176 = vsel %vm148, %v125, 0
    %v178 = vsel %vm148, %v175, 0
    %180 = vmatpush.xpose.msra.mxu0 0.0
    %181 = vmatpush.xpose.msra.mxu0 0.0
    %182 = vmatpush.xpose.msra.mxu0 0.0
    %183 = vmatpush.xpose.msra.mxu0 0.0
    %184 = vmatpush.xpose.msra.mxu0 0.0
    %185 = vmatpush.xpose.msra.mxu0 0.0
    %186 = vmatpush.xpose.msra.mxu0 0.0
    %187 = vmatpush.xpose.msra.mxu0 0.0
    %188 = vmatpush.xpose.msra.mxu0 0.0
    %189 = vmatpush.xpose.msra.mxu0 0.0
    %190 = vmatpush.xpose.msra.mxu0 0.0
    %191 = vmatpush.xpose.msra.mxu0 0.0
    %192 = vmatpush.xpose.msra.mxu0 0.0
    %193 = vmatpush.xpose.msra.mxu0 0.0
    %194 = vmatpush.xpose.msra.mxu0 0.0
    %195 = vmatpush.xpose.msra.mxu0 %v178
    %196 = vmatmul.f32.gmra.mxu0 %v176
    %v197 = vpop.f32.mrf.mxu0
    %v198 = vadd.f32 %v144, %v197
    %199 = vdwg.mxu0
    %v200 = vsel %vm148, %v171, -inf
    %201 = vmax.xlane.f32.xlu0 %v200
    %v202 = vpop.xlane.xlu0 %201
    %v203 = vsel %vm148, %v198, -inf
    %204 = vmax.xlane.f32.xlu0 %v203
    %v205 = vpop.xlane.xlu0 %204
    %v206 = vsub.f32 %v171, %v202
    %v207 = vsub.f32 %v198, %v205
    %v208 = vmul.f32 %v206, 1.442695
    %v209 = vpow.pop %v208
    %v210 = vmul.f32 %v207, 1.442695
    %v211 = vpow.pop %v210
    %v212 = vsel %vm148, %v209, 0.0
    %213 = vadd.xlane.f32.xlu0 %v212
    %v214 = vpop.xlane.xlu0 %213
    %v215 = vsel %vm148, %v211, 0.0
    %216 = vadd.xlane.f32.xlu0 %v215
    %v217 = vpop.xlane.xlu0 %216
    %v218 = vrcp.pop %v214
    %v219 = vrcp.pop %v217
    %v220 = vmul.f32 %v209, %v218
    %v221 = vmul.f32 %v211, %v219
    %v222 = vmul.f32 %v220, %v137
    %v223 = vmul.f32 %v221, %v138
    %224 = vrot.lane.b32.xlu0 %v122, 64
    %v225 = vpop.permute.xlu0 %224
    %v228 = vsel %vm148, %v222, 0
    %230 = vmatpush.msra.mxu0 0.0
    %231 = vmatpush.msra.mxu0 0.0
    %232 = vmatpush.msra.mxu0 0.0
    %233 = vmatpush.msra.mxu0 0.0
    %234 = vmatpush.msra.mxu0 0.0
    %235 = vmatpush.msra.mxu0 0.0
    %236 = vmatpush.msra.mxu0 0.0
    %237 = vmatpush.msra.mxu0 0.0
    %238 = vmatpush.msra.mxu0 0.0
    %239 = vmatpush.msra.mxu0 0.0
    %240 = vmatpush.msra.mxu0 0.0
    %241 = vmatpush.msra.mxu0 0.0
    %242 = vmatpush.msra.mxu0 0.0
    %243 = vmatpush.msra.mxu0 0.0
    %244 = vmatpush.msra.mxu0 0.0
    %245 = vmatpush.msra.mxu0 %v225
    %246 = vmatmul.f32.gmra.mxu0 %v228
    %v247 = vpop.f32.mrf.mxu0
    %v248 = vadd.f32 0.0, %v247
    %249 = vdwg.mxu0
    %250 = vrot.lane.b32.xlu0 %v125, 64
    %v251 = vpop.permute.xlu0 %250
    %v254 = vsel %vm148, %v223, 0
    %256 = vmatpush.msra.mxu0 0.0
    %257 = vmatpush.msra.mxu0 0.0
    %258 = vmatpush.msra.mxu0 0.0
    %259 = vmatpush.msra.mxu0 0.0
    %260 = vmatpush.msra.mxu0 0.0
    %261 = vmatpush.msra.mxu0 0.0
    %262 = vmatpush.msra.mxu0 0.0
    %263 = vmatpush.msra.mxu0 0.0
    %264 = vmatpush.msra.mxu0 0.0
    %265 = vmatpush.msra.mxu0 0.0
    %266 = vmatpush.msra.mxu0 0.0
    %267 = vmatpush.msra.mxu0 0.0
    %268 = vmatpush.msra.mxu0 0.0
    %269 = vmatpush.msra.mxu0 0.0
    %270 = vmatpush.msra.mxu0 0.0
    %271 = vmatpush.msra.mxu0 %v251
    %272 = vmatmul.f32.gmra.mxu0 %v254
    %v273 = vpop.f32.mrf.mxu0
    %v274 = vadd.f32 0.0, %v273
    %275 = vdwg.mxu0
    %276 = vrot.lane.b32.xlu0 %v122, 120
    %v277 = vpop.permute.xlu0 %276
    %278 = vrot.lane.b32.xlu0 %v122, 88
    %v279 = vpop.permute.xlu0 %278
    %v280 = vsel %vm148, %v277, 0
    %v282 = vsel %vm148, %v279, 0
    %284 = vmatpush.xpose.msra.mxu0 0.0
    %285 = vmatpush.xpose.msra.mxu0 0.0
    %286 = vmatpush.xpose.msra.mxu0 0.0
    %287 = vmatpush.xpose.msra.mxu0 0.0
    %288 = vmatpush.xpose.msra.mxu0 0.0
    %289 = vmatpush.xpose.msra.mxu0 0.0
    %290 = vmatpush.xpose.msra.mxu0 0.0
    %291 = vmatpush.xpose.msra.mxu0 0.0
    %292 = vmatpush.xpose.msra.mxu0 0.0
    %293 = vmatpush.xpose.msra.mxu0 0.0
    %294 = vmatpush.xpose.msra.mxu0 0.0
    %295 = vmatpush.xpose.msra.mxu0 0.0
    %296 = vmatpush.xpose.msra.mxu0 0.0
    %297 = vmatpush.xpose.msra.mxu0 0.0
    %298 = vmatpush.xpose.msra.mxu0 0.0
    %299 = vmatpush.xpose.msra.mxu0 %v282
    %300 = vmatmul.f32.gmra.mxu0 %v280
    %v301 = vpop.f32.mrf.mxu0
    %v302 = vadd.f32 %v143, %v301
    %303 = vdwg.mxu0
    %304 = vrot.lane.b32.xlu0 %v125, 120
    %v305 = vpop.permute.xlu0 %304
    %306 = vrot.lane.b32.xlu0 %v125, 88
    %v307 = vpop.permute.xlu0 %306
    %v308 = vsel %vm148, %v305, 0
    %v310 = vsel %vm148, %v307, 0
    %312 = vmatpush.xpose.msra.mxu0 0.0
    %313 = vmatpush.xpose.msra.mxu0 0.0
    %314 = vmatpush.xpose.msra.mxu0 0.0
    %315 = vmatpush.xpose.msra.mxu0 0.0
    %316 = vmatpush.xpose.msra.mxu0 0.0
    %317 = vmatpush.xpose.msra.mxu0 0.0
    %318 = vmatpush.xpose.msra.mxu0 0.0
    %319 = vmatpush.xpose.msra.mxu0 0.0
    %320 = vmatpush.xpose.msra.mxu0 0.0
    %321 = vmatpush.xpose.msra.mxu0 0.0
    %322 = vmatpush.xpose.msra.mxu0 0.0
    %323 = vmatpush.xpose.msra.mxu0 0.0
    %324 = vmatpush.xpose.msra.mxu0 0.0
    %325 = vmatpush.xpose.msra.mxu0 0.0
    %326 = vmatpush.xpose.msra.mxu0 0.0
    %327 = vmatpush.xpose.msra.mxu0 %v310
    %328 = vmatmul.f32.gmra.mxu0 %v308
    %v329 = vpop.f32.mrf.mxu0
    %v330 = vadd.f32 %v144, %v329
    %331 = vdwg.mxu0
    %v332 = vsel %vm148, %v302, -inf
    %333 = vmax.xlane.f32.xlu0 %v332
    %v334 = vpop.xlane.xlu0 %333
    %v335 = vsel %vm148, %v330, -inf
    %336 = vmax.xlane.f32.xlu0 %v335
    %v337 = vpop.xlane.xlu0 %336
    %v338 = vsub.f32 %v302, %v334
    %v339 = vsub.f32 %v330, %v337
    %v340 = vmul.f32 %v338, 1.442695
    %v341 = vpow.pop %v340
    %v342 = vmul.f32 %v339, 1.442695
    %v343 = vpow.pop %v342
    %v344 = vsel %vm148, %v341, 0.0
    %345 = vadd.xlane.f32.xlu0 %v344
    %v346 = vpop.xlane.xlu0 %345
    %v347 = vsel %vm148, %v343, 0.0
    %348 = vadd.xlane.f32.xlu0 %v347
    %v349 = vpop.xlane.xlu0 %348
    %v350 = vrcp.pop %v346
    %v351 = vrcp.pop %v349
    %v352 = vmul.f32 %v341, %v350
    %v353 = vmul.f32 %v343, %v351
    %v354 = vmul.f32 %v352, %v137
    %v355 = vmul.f32 %v353, %v138
    %356 = vrot.lane.b32.xlu0 %v122, 56
    %v357 = vpop.permute.xlu0 %356
    %v360 = vsel %vm148, %v354, 0
    %362 = vmatpush.msra.mxu0 0.0
    %363 = vmatpush.msra.mxu0 0.0
    %364 = vmatpush.msra.mxu0 0.0
    %365 = vmatpush.msra.mxu0 0.0
    %366 = vmatpush.msra.mxu0 0.0
    %367 = vmatpush.msra.mxu0 0.0
    %368 = vmatpush.msra.mxu0 0.0
    %369 = vmatpush.msra.mxu0 0.0
    %370 = vmatpush.msra.mxu0 0.0
    %371 = vmatpush.msra.mxu0 0.0
    %372 = vmatpush.msra.mxu0 0.0
    %373 = vmatpush.msra.mxu0 0.0
    %374 = vmatpush.msra.mxu0 0.0
    %375 = vmatpush.msra.mxu0 0.0
    %376 = vmatpush.msra.mxu0 0.0
    %377 = vmatpush.msra.mxu0 %v357
    %378 = vmatmul.f32.gmra.mxu0 %v360
    %v379 = vpop.f32.mrf.mxu0
    %v380 = vadd.f32 0.0, %v379
    %381 = vdwg.mxu0
    %382 = vrot.lane.b32.xlu0 %v125, 56
    %v383 = vpop.permute.xlu0 %382
    %v386 = vsel %vm148, %v355, 0
    %388 = vmatpush.msra.mxu0 0.0
    %389 = vmatpush.msra.mxu0 0.0
    %390 = vmatpush.msra.mxu0 0.0
    %391 = vmatpush.msra.mxu0 0.0
    %392 = vmatpush.msra.mxu0 0.0
    %393 = vmatpush.msra.mxu0 0.0
    %394 = vmatpush.msra.mxu0 0.0
    %395 = vmatpush.msra.mxu0 0.0
    %396 = vmatpush.msra.mxu0 0.0
    %397 = vmatpush.msra.mxu0 0.0
    %398 = vmatpush.msra.mxu0 0.0
    %399 = vmatpush.msra.mxu0 0.0
    %400 = vmatpush.msra.mxu0 0.0
    %401 = vmatpush.msra.mxu0 0.0
    %402 = vmatpush.msra.mxu0 0.0
    %403 = vmatpush.msra.mxu0 %v383
    %404 = vmatmul.f32.gmra.mxu0 %v386
    %v405 = vpop.f32.mrf.mxu0
    %v406 = vadd.f32 0.0, %v405
    %407 = vdwg.mxu0
    %408 = vrot.lane.b32.xlu0 %v122, 112
    %v409 = vpop.permute.xlu0 %408
    %410 = vrot.lane.b32.xlu0 %v122, 80
    %v411 = vpop.permute.xlu0 %410
    %v412 = vsel %vm148, %v409, 0
    %v414 = vsel %vm148, %v411, 0
    %416 = vmatpush.xpose.msra.mxu0 0.0
    %417 = vmatpush.xpose.msra.mxu0 0.0
    %418 = vmatpush.xpose.msra.mxu0 0.0
    %419 = vmatpush.xpose.msra.mxu0 0.0
    %420 = vmatpush.xpose.msra.mxu0 0.0
    %421 = vmatpush.xpose.msra.mxu0 0.0
    %422 = vmatpush.xpose.msra.mxu0 0.0
    %423 = vmatpush.xpose.msra.mxu0 0.0
    %424 = vmatpush.xpose.msra.mxu0 0.0
    %425 = vmatpush.xpose.msra.mxu0 0.0
    %426 = vmatpush.xpose.msra.mxu0 0.0
    %427 = vmatpush.xpose.msra.mxu0 0.0
    %428 = vmatpush.xpose.msra.mxu0 0.0
    %429 = vmatpush.xpose.msra.mxu0 0.0
    %430 = vmatpush.xpose.msra.mxu0 0.0
    %431 = vmatpush.xpose.msra.mxu0 %v414
    %432 = vmatmul.f32.gmra.mxu0 %v412
    %v433 = vpop.f32.mrf.mxu0
    %v434 = vadd.f32 %v143, %v433
    %435 = vdwg.mxu0
    %436 = vrot.lane.b32.xlu0 %v125, 112
    %v437 = vpop.permute.xlu0 %436
    %438 = vrot.lane.b32.xlu0 %v125, 80
    %v439 = vpop.permute.xlu0 %438
    %v440 = vsel %vm148, %v437, 0
    %v442 = vsel %vm148, %v439, 0
    %444 = vmatpush.xpose.msra.mxu0 0.0
    %445 = vmatpush.xpose.msra.mxu0 0.0
    %446 = vmatpush.xpose.msra.mxu0 0.0
    %447 = vmatpush.xpose.msra.mxu0 0.0
    %448 = vmatpush.xpose.msra.mxu0 0.0
    %449 = vmatpush.xpose.msra.mxu0 0.0
    %450 = vmatpush.xpose.msra.mxu0 0.0
    %451 = vmatpush.xpose.msra.mxu0 0.0
    %452 = vmatpush.xpose.msra.mxu0 0.0
    %453 = vmatpush.xpose.msra.mxu0 0.0
    %454 = vmatpush.xpose.msra.mxu0 0.0
    %455 = vmatpush.xpose.msra.mxu0 0.0
    %456 = vmatpush.xpose.msra.mxu0 0.0
    %457 = vmatpush.xpose.msra.mxu0 0.0
    %458 = vmatpush.xpose.msra.mxu0 0.0
    %459 = vmatpush.xpose.msra.mxu0 %v442
    %460 = vmatmul.f32.gmra.mxu0 %v440
    %v461 = vpop.f32.mrf.mxu0
    %v462 = vadd.f32 %v144, %v461
    %463 = vdwg.mxu0
    %v464 = vsel %vm148, %v434, -inf
    %465 = vmax.xlane.f32.xlu0 %v464
    %v466 = vpop.xlane.xlu0 %465
    %v467 = vsel %vm148, %v462, -inf
    %468 = vmax.xlane.f32.xlu0 %v467
    %v469 = vpop.xlane.xlu0 %468
    %v470 = vsub.f32 %v434, %v466
    %v471 = vsub.f32 %v462, %v469
    %v472 = vmul.f32 %v470, 1.442695
    %v473 = vpow.pop %v472
    %v474 = vmul.f32 %v471, 1.442695
    %v475 = vpow.pop %v474
    %v476 = vsel %vm148, %v473, 0.0
    %477 = vadd.xlane.f32.xlu0 %v476
    %v478 = vpop.xlane.xlu0 %477
    %v479 = vsel %vm148, %v475, 0.0
    %480 = vadd.xlane.f32.xlu0 %v479
    %v481 = vpop.xlane.xlu0 %480
    %v482 = vrcp.pop %v478
    %v483 = vrcp.pop %v481
    %v484 = vmul.f32 %v473, %v482
    %v485 = vmul.f32 %v475, %v483
    %v486 = vmul.f32 %v484, %v137
    %v487 = vmul.f32 %v485, %v138
    %488 = vrot.lane.b32.xlu0 %v122, 48
    %v489 = vpop.permute.xlu0 %488
    %v492 = vsel %vm148, %v486, 0
    %494 = vmatpush.msra.mxu0 0.0
    %495 = vmatpush.msra.mxu0 0.0
    %496 = vmatpush.msra.mxu0 0.0
    %497 = vmatpush.msra.mxu0 0.0
    %498 = vmatpush.msra.mxu0 0.0
    %499 = vmatpush.msra.mxu0 0.0
    %500 = vmatpush.msra.mxu0 0.0
    %501 = vmatpush.msra.mxu0 0.0
    %502 = vmatpush.msra.mxu0 0.0
    %503 = vmatpush.msra.mxu0 0.0
    %504 = vmatpush.msra.mxu0 0.0
    %505 = vmatpush.msra.mxu0 0.0
    %506 = vmatpush.msra.mxu0 0.0
    %507 = vmatpush.msra.mxu0 0.0
    %508 = vmatpush.msra.mxu0 0.0
    %509 = vmatpush.msra.mxu0 %v489
    %510 = vmatmul.f32.gmra.mxu0 %v492
    %v511 = vpop.f32.mrf.mxu0
    %v512 = vadd.f32 0.0, %v511
    %513 = vdwg.mxu0
    %514 = vrot.lane.b32.xlu0 %v125, 48
    %v515 = vpop.permute.xlu0 %514
    %v518 = vsel %vm148, %v487, 0
    %520 = vmatpush.msra.mxu0 0.0
    %521 = vmatpush.msra.mxu0 0.0
    %522 = vmatpush.msra.mxu0 0.0
    %523 = vmatpush.msra.mxu0 0.0
    %524 = vmatpush.msra.mxu0 0.0
    %525 = vmatpush.msra.mxu0 0.0
    %526 = vmatpush.msra.mxu0 0.0
    %527 = vmatpush.msra.mxu0 0.0
    %528 = vmatpush.msra.mxu0 0.0
    %529 = vmatpush.msra.mxu0 0.0
    %530 = vmatpush.msra.mxu0 0.0
    %531 = vmatpush.msra.mxu0 0.0
    %532 = vmatpush.msra.mxu0 0.0
    %533 = vmatpush.msra.mxu0 0.0
    %534 = vmatpush.msra.mxu0 0.0
    %535 = vmatpush.msra.mxu0 %v515
    %536 = vmatmul.f32.gmra.mxu0 %v518
    %v537 = vpop.f32.mrf.mxu0
    %v538 = vadd.f32 0.0, %v537
    %539 = vdwg.mxu0
    %540 = vrot.lane.b32.xlu0 %v122, 104
    %v541 = vpop.permute.xlu0 %540
    %542 = vrot.lane.b32.xlu0 %v122, 72
    %v543 = vpop.permute.xlu0 %542
    %v544 = vsel %vm148, %v541, 0
    %v546 = vsel %vm148, %v543, 0
    %548 = vmatpush.xpose.msra.mxu0 0.0
    %549 = vmatpush.xpose.msra.mxu0 0.0
    %550 = vmatpush.xpose.msra.mxu0 0.0
    %551 = vmatpush.xpose.msra.mxu0 0.0
    %552 = vmatpush.xpose.msra.mxu0 0.0
    %553 = vmatpush.xpose.msra.mxu0 0.0
    %554 = vmatpush.xpose.msra.mxu0 0.0
    %555 = vmatpush.xpose.msra.mxu0 0.0
    %556 = vmatpush.xpose.msra.mxu0 0.0
    %557 = vmatpush.xpose.msra.mxu0 0.0
    %558 = vmatpush.xpose.msra.mxu0 0.0
    %559 = vmatpush.xpose.msra.mxu0 0.0
    %560 = vmatpush.xpose.msra.mxu0 0.0
    %561 = vmatpush.xpose.msra.mxu0 0.0
    %562 = vmatpush.xpose.msra.mxu0 0.0
    %563 = vmatpush.xpose.msra.mxu0 %v546
    %564 = vmatmul.f32.gmra.mxu0 %v544
    %v565 = vpop.f32.mrf.mxu0
    %v566 = vadd.f32 %v143, %v565
    %567 = vdwg.mxu0
    %568 = vrot.lane.b32.xlu0 %v125, 104
    %v569 = vpop.permute.xlu0 %568
    %570 = vrot.lane.b32.xlu0 %v125, 72
    %v571 = vpop.permute.xlu0 %570
    %v572 = vsel %vm148, %v569, 0
    %v574 = vsel %vm148, %v571, 0
    %576 = vmatpush.xpose.msra.mxu0 0.0
    %577 = vmatpush.xpose.msra.mxu0 0.0
    %578 = vmatpush.xpose.msra.mxu0 0.0
    %579 = vmatpush.xpose.msra.mxu0 0.0
    %580 = vmatpush.xpose.msra.mxu0 0.0
    %581 = vmatpush.xpose.msra.mxu0 0.0
    %582 = vmatpush.xpose.msra.mxu0 0.0
    %583 = vmatpush.xpose.msra.mxu0 0.0
    %584 = vmatpush.xpose.msra.mxu0 0.0
    %585 = vmatpush.xpose.msra.mxu0 0.0
    %586 = vmatpush.xpose.msra.mxu0 0.0
    %587 = vmatpush.xpose.msra.mxu0 0.0
    %588 = vmatpush.xpose.msra.mxu0 0.0
    %589 = vmatpush.xpose.msra.mxu0 0.0
    %590 = vmatpush.xpose.msra.mxu0 0.0
    %591 = vmatpush.xpose.msra.mxu0 %v574
    %592 = vmatmul.f32.gmra.mxu0 %v572
    %v593 = vpop.f32.mrf.mxu0
    %v594 = vadd.f32 %v144, %v593
    %595 = vdwg.mxu0
    %v596 = vsel %vm148, %v566, -inf
    %597 = vmax.xlane.f32.xlu0 %v596
    %v598 = vpop.xlane.xlu0 %597
    %v599 = vsel %vm148, %v594, -inf
    %600 = vmax.xlane.f32.xlu0 %v599
    %v601 = vpop.xlane.xlu0 %600
    %v602 = vsub.f32 %v566, %v598
    %v603 = vsub.f32 %v594, %v601
    %v604 = vmul.f32 %v602, 1.442695
    %v605 = vpow.pop %v604
    %v606 = vmul.f32 %v603, 1.442695
    %v607 = vpow.pop %v606
    %v608 = vsel %vm148, %v605, 0.0
    %609 = vadd.xlane.f32.xlu0 %v608
    %v610 = vpop.xlane.xlu0 %609
    %v611 = vsel %vm148, %v607, 0.0
    %612 = vadd.xlane.f32.xlu0 %v611
    %v613 = vpop.xlane.xlu0 %612
    %v614 = vrcp.pop %v610
    %v615 = vrcp.pop %v613
    %v616 = vmul.f32 %v605, %v614
    %v617 = vmul.f32 %v607, %v615
    %v618 = vmul.f32 %v616, %v137
    %v619 = vmul.f32 %v617, %v138
    %620 = vrot.lane.b32.xlu0 %v122, 40
    %v621 = vpop.permute.xlu0 %620
    %v624 = vsel %vm148, %v618, 0
    %626 = vmatpush.msra.mxu0 0.0
    %627 = vmatpush.msra.mxu0 0.0
    %628 = vmatpush.msra.mxu0 0.0
    %629 = vmatpush.msra.mxu0 0.0
    %630 = vmatpush.msra.mxu0 0.0
    %631 = vmatpush.msra.mxu0 0.0
    %632 = vmatpush.msra.mxu0 0.0
    %633 = vmatpush.msra.mxu0 0.0
    %634 = vmatpush.msra.mxu0 0.0
    %635 = vmatpush.msra.mxu0 0.0
    %636 = vmatpush.msra.mxu0 0.0
    %637 = vmatpush.msra.mxu0 0.0
    %638 = vmatpush.msra.mxu0 0.0
    %639 = vmatpush.msra.mxu0 0.0
    %640 = vmatpush.msra.mxu0 0.0
    %641 = vmatpush.msra.mxu0 %v621
    %642 = vmatmul.f32.gmra.mxu0 %v624
    %v643 = vpop.f32.mrf.mxu0
    %v644 = vadd.f32 0.0, %v643
    %645 = vdwg.mxu0
    %646 = vrot.lane.b32.xlu0 %v125, 40
    %v647 = vpop.permute.xlu0 %646
    %v650 = vsel %vm148, %v619, 0
    %652 = vmatpush.msra.mxu0 0.0
    %653 = vmatpush.msra.mxu0 0.0
    %654 = vmatpush.msra.mxu0 0.0
    %655 = vmatpush.msra.mxu0 0.0
    %656 = vmatpush.msra.mxu0 0.0
    %657 = vmatpush.msra.mxu0 0.0
    %658 = vmatpush.msra.mxu0 0.0
    %659 = vmatpush.msra.mxu0 0.0
    %660 = vmatpush.msra.mxu0 0.0
    %661 = vmatpush.msra.mxu0 0.0
    %662 = vmatpush.msra.mxu0 0.0
    %663 = vmatpush.msra.mxu0 0.0
    %664 = vmatpush.msra.mxu0 0.0
    %665 = vmatpush.msra.mxu0 0.0
    %666 = vmatpush.msra.mxu0 0.0
    %667 = vmatpush.msra.mxu0 %v647
    %668 = vmatmul.f32.gmra.mxu0 %v650
    %v669 = vpop.f32.mrf.mxu0
    %v670 = vadd.f32 0.0, %v669
    %671 = vdwg.mxu0
    %674 = vrot.lane.b32.xlu0 %v380, 8
    %v675 = vpop.permute.xlu0 %674
    %676 = vrot.lane.b32.xlu0 %v406, 8
    %v677 = vpop.permute.xlu0 %676
    %682 = vrot.lane.b32.xlu0 %v512, 16
    %v683 = vpop.permute.xlu0 %682
    %684 = vrot.lane.b32.xlu0 %v538, 16
    %v685 = vpop.permute.xlu0 %684
    %690 = vrot.lane.b32.xlu0 %v644, 24
    %v691 = vpop.permute.xlu0 %690
    %692 = vrot.lane.b32.xlu0 %v670, 24
    %v693 = vpop.permute.xlu0 %692
    %v696 = vsel %vm148, %v248, %v675
    %v697 = vsel %vm148, %v274, %v677
    %vm698 = vcmask 130048
    %v699 = vsel %vm698, %v696, %v683
    %v700 = vsel %vm698, %v697, %v685
    %vm701 = vcmask 195584
    %v702 = vsel %vm701, %v699, %v691
    %v703 = vsel %vm701, %v700, %v693
    %v704 = vld [vmem:[#allocation8] sm:$0xff]
    %v705 = vld [vmem:[#allocation8 + $0x8] sm:$0xff]
    %v706 = vld [vmem:[#allocation8 + $0x10] sm:$0xff]
    %v707 = vld [vmem:[#allocation8 + $0x18] sm:$0xff]
    %v708 = vld [vmem:[%s5] sm:$0x1]
    %v710 = vperm.slane %v708, 0
    %v713 = vsel %vm97, %v702, 0
    %v716 = vsel %vm97, %v703, 0
    %718 = vmatpush.msra.mxu0 0.0
    %719 = vmatpush.msra.mxu0 0.0
    %720 = vmatpush.msra.mxu0 0.0
    %721 = vmatpush.msra.mxu0 0.0
    %722 = vmatpush.msra.mxu0 0.0
    %723 = vmatpush.msra.mxu0 0.0
    %724 = vmatpush.msra.mxu0 0.0
    %725 = vmatpush.msra.mxu0 0.0
    %726 = vmatpush.msra.mxu0 0.0
    %727 = vmatpush.msra.mxu0 0.0
    %728 = vmatpush.msra.mxu0 0.0
    %729 = vmatpush.msra.mxu0 0.0
    %730 = vmatpush.msra.mxu0 %v707
    %731 = vmatpush.msra.mxu0 %v706
    %732 = vmatpush.msra.mxu0 %v705
    %733 = vmatpush.msra.mxu0 %v704
    %734 = vmatmul.f32.gmra.mxu0 %v713
    %v735 = vpop.f32.mrf.mxu0
    %v736 = vadd.f32 %v710, %v735
    %737 = vmatmul.f32.gmra.mxu0 %v716
    %v738 = vpop.f32.mrf.mxu0
    %v739 = vadd.f32 %v710, %v738
    %740 = vdwg.mxu0
    %741 = vst.msk [vmem:[#allocation10] sm:$0xff] %vm97, %v736
    %742 = vst.msk [vmem:[#allocation10 + $0x8] sm:$0xff] %vm97, %v739
    // Predicated region
    $region42: #{tpu_custom_call.1} parent=1 // pred_check
      _
    $region43: #{tpu_custom_call.1} parent=1 // pred_check_branch
      %744 = sbr.rel (0) target = $region45
    $region44: #{tpu_custom_call.1} parent=1 // pred_region
      %746 = vsyncadd [#allocation4], 0
      %s747 = sshll.u32 [#allocation10], 4
      %s748 = int_to_ptr.vmem [resolvable:$true] %s747
      %s749 = sshll.u32 %s6, 4
      %s750 = int_to_ptr.hbm [resolvable:$true] %s749
      %755 = dma.vmem_to_hbm [thread:$0]  %s748, 256, %s750, [#allocation4], 128, 128, 8
    $region45: #{tpu_custom_call.1} parent=1 // pred_fallthru
      _
    // Predicated region
    $region46: #{tpu_custom_call.1} parent=1 // pred_check
      _
    $region47: #{tpu_custom_call.1} parent=1 // pred_check_branch
      %757 = sbr.rel (0) target = $region49
    $region48: #{tpu_custom_call.1} parent=1 // pred_region
      %759 = dma.done [#allocation4], 256
    $region49: #{tpu_custom_call.1} parent=1 // pred_fallthru
      _
    %760 = vsyncpa [#allocation3], 1
    %761 = vsyncpa [#allocation6], 1
    %762 = vsyncpa [#allocation9], 1
    %763 = vsyncpa [#allocation4], 1

</llo_original>
